<compile_context>
chip_gen: v5e
topology: v5e:2x2
jax: 0.10.0
libtpu: 0.0.40
codegen_flags: <defaults>
</compile_context>

<pallas_src>
import functools

import jax
import jax.numpy as jnp
from jax import lax
from jax.experimental import pallas as pl
from jax.experimental.pallas import tpu as pltpu

KSIZE = 3
NEG_SLOPE = 0.01  # torch.nn.LeakyReLU default


def conv_bn_lrelu_kernel(x_ref, w_ref, b_ref, o_ref, *, H, W):
    """One batch element per grid step, channels-first / lane-dense layout.

    x_ref: (1, Cin, H*W)   flattened NCHW activation (VMEM)
    w_ref: (9, Cout, Cin)  per-tap conv weights with BN scale pre-folded (VMEM)
    b_ref: (Cout, 1)       folded conv-bias + BN shift (VMEM)
    o_ref: (1, Cout, H*W)  output tile; lane axis = H*W (VMEM)
    """
    HW = H * W
    Cout = o_ref.shape[1]

    x = x_ref[0]                                          # (Cin, HW) f32

    # Border masks reproducing the zero "same" padding, computed once per step.
    # Row/col indices are derived in f32 (exact for these magnitudes) to stay on
    # plain VPU ops.
    pos = lax.broadcasted_iota(jnp.int32, (1, HW), 1).astype(jnp.float32)
    h_idx = jnp.floor((pos + 0.5) * (1.0 / float(W)))     # row index, exact
    w_idx = pos - h_idx * float(W)                        # column index, exact
    ones = jnp.ones((1, HW), dtype=jnp.float32)
    h_ok = {-1: (h_idx >= 0.5).astype(jnp.float32),
            0: ones,
            1: (h_idx <= H - 1.5).astype(jnp.float32)}
    w_ok = {-1: (w_idx >= 0.5).astype(jnp.float32),
            0: ones,
            1: (w_idx <= W - 1.5).astype(jnp.float32)}

    acc = jnp.zeros((Cout, HW), dtype=jnp.float32)
    # 3x3 conv as 9 lane-rolled (Cout, Cin) @ (Cin, HW) MXU matmuls.
    for kh in range(KSIZE):
        dh = kh - 1
        for kw in range(KSIZE):
            dw = kw - 1
            # patch[c, p] = x_flat[c, p + dh*W + dw] (masked at image borders)
            shift = (-(dh * W + dw)) % HW                 # non-negative, static
            shifted = x if shift == 0 else pltpu.roll(x, shift, 1)
            if dh == 0 and dw == 0:
                patch = shifted
            else:
                patch = shifted * (h_ok[dh] * w_ok[dw])
            acc = acc + jnp.dot(w_ref[kh * KSIZE + kw], patch,
                                preferred_element_type=jnp.float32)

    # Folded bias (BN shift + conv bias) and LeakyReLU.
    y = acc + b_ref[...]                                  # (Cout,1) lane-bcast
    y = jnp.where(y > 0, y, NEG_SLOPE * y)
    o_ref[0] = y.astype(o_ref.dtype)


@jax.jit
def convolution_layer(x_nchw, w_oihw, conv_bias, bn_gamma, bn_beta,
                      bn_mean, bn_var, eps=1e-5):
    """Forward pass of ConvolutionLayer. Input/output are NCHW (PyTorch)."""
    N, Cin, H, W = x_nchw.shape
    Cout = w_oihw.shape[0]
    HW = H * W

    # NCHW -> (N, Cin, H*W): metadata-only reshape, no transpose, no pad.
    x_flat = x_nchw.reshape(N, Cin, HW).astype(jnp.float32)

    # Fold eval-mode BatchNorm into the conv parameters (tiny host-side ops):
    #   y = (conv(x) + b - mean) * gamma/sqrt(var+eps) + beta
    #     = conv_{w*scale}(x) + [beta + (b - mean) * scale]
    inv_std = lax.rsqrt(bn_var.astype(jnp.float32) + eps)
    scale = (bn_gamma * inv_std).astype(jnp.float32)          # (Cout,)
    w_fold = w_oihw.astype(jnp.float32) * scale[:, None, None, None]
    # OIHW -> (tap = kh*3+kw, Cout, Cin)
    w_taps = jnp.transpose(w_fold, (2, 3, 0, 1)).reshape(KSIZE * KSIZE,
                                                         Cout, Cin)
    bias = (bn_beta + (conv_bias - bn_mean) * scale).astype(jnp.float32)
    bias = bias.reshape(Cout, 1)

    flops = 2 * N * KSIZE * KSIZE * Cin * Cout * HW + 4 * N * Cout * HW
    bytes_accessed = 4 * (x_flat.size + w_taps.size + bias.size
                          + N * Cout * HW)
    cost = pl.CostEstimate(flops=flops, transcendentals=0,
                           bytes_accessed=bytes_accessed)

    out_flat = pl.pallas_call(
        functools.partial(conv_bn_lrelu_kernel, H=H, W=W),
        out_shape=jax.ShapeDtypeStruct((N, Cout, HW), jnp.float32),
        grid_spec=pltpu.PrefetchScalarGridSpec(
            num_scalar_prefetch=0,
            grid=(N,),
            in_specs=[
                pl.BlockSpec((1, Cin, HW), lambda n: (n, 0, 0)),
                pl.BlockSpec((KSIZE * KSIZE, Cout, Cin), lambda n: (0, 0, 0)),
                pl.BlockSpec((Cout, 1), lambda n: (0, 0)),
            ],
            out_specs=pl.BlockSpec((1, Cout, HW), lambda n: (n, 0, 0)),
        ),
        compiler_params=pltpu.CompilerParams(
            dimension_semantics=("parallel",)),
        cost_estimate=cost,
    )(x_flat, w_taps, bias)

    # (N, Cout, H*W) -> (N, Cout, H, W): metadata-only reshape; output is
    # already in the PyTorch NCHW convention (no transpose pass).
    return out_flat.reshape(N, Cout, H, W)


def _reference(x_nchw, w_oihw, conv_bias, bn_gamma, bn_beta, bn_mean, bn_var,
               eps=1e-5):
    """Pure-JAX reference (lax conv + eval BN + LeakyReLU), NCHW."""
    x_nhwc = jnp.transpose(x_nchw, (0, 2, 3, 1))
    w_hwio = jnp.transpose(w_oihw, (2, 3, 1, 0))
    y = lax.conv_general_dilated(
        x_nhwc, w_hwio, window_strides=(1, 1), padding="SAME",
        dimension_numbers=("NHWC", "HWIO", "NHWC"))
    y = y + conv_bias
    inv_std = lax.rsqrt(bn_var + eps)
    y = (y - bn_mean) * inv_std * bn_gamma + bn_beta
    y = jnp.where(y > 0, y, NEG_SLOPE * y)
    return jnp.transpose(y, (0, 3, 1, 2))


if __name__ == "__main__":
    # Small shapes consistent with the module: N, filter_in, H, W / filter_out.
    N, C_IN, H, W = 2, 4, 16, 16
    C_OUT = 8

    key = jax.random.PRNGKey(0)
    k_x, k_w, k_b, k_g, k_beta, k_m, k_v = jax.random.split(key, 7)

    x = jax.random.normal(k_x, (N, C_IN, H, W), dtype=jnp.float32)

    # Deterministic synthetic parameters (Conv2d + BatchNorm2d shapes).
    w_oihw = 0.1 * jax.random.normal(k_w, (C_OUT, C_IN, KSIZE, KSIZE),
                                     dtype=jnp.float32)
    conv_bias = 0.1 * jax.random.normal(k_b, (C_OUT,), dtype=jnp.float32)
    bn_gamma = 1.0 + 0.1 * jax.random.normal(k_g, (C_OUT,), dtype=jnp.float32)
    bn_beta = 0.1 * jax.random.normal(k_beta, (C_OUT,), dtype=jnp.float32)
    bn_mean = 0.1 * jax.random.normal(k_m, (C_OUT,), dtype=jnp.float32)
    bn_var = jnp.abs(jax.random.normal(k_v, (C_OUT,), dtype=jnp.float32)) + 0.5

    out = convolution_layer(x, w_oihw, conv_bias, bn_gamma, bn_beta,
                            bn_mean, bn_var)
    out = jax.block_until_ready(out)
    assert out.shape == (N, C_OUT, H, W), out.shape

    ref = _reference(x, w_oihw, conv_bias, bn_gamma, bn_beta, bn_mean, bn_var)
    ref = jax.block_until_ready(ref)
    assert jnp.allclose(out, ref, atol=1e-4, rtol=1e-4), (
        float(jnp.max(jnp.abs(out - ref))))

    print("KERNEL_OK")
</pallas_src>

<mosaic_0001>
module attributes {stable_mosaic.version = 11 : i64} {
  func.func @conv_bn_lrelu_kernel(%arg0: i32, %arg1: memref<1x4x256xf32, #tpu.memory_space<vmem>>, %arg2: memref<9x8x4xf32, #tpu.memory_space<vmem>>, %arg3: memref<8x1xf32, #tpu.memory_space<vmem>>, %arg4: memref<1x8x256xf32, #tpu.memory_space<vmem>>) attributes {dimension_semantics = [#tpu.dimension_semantics<parallel>], iteration_bounds = array<i64: 2>, scalar_prefetch = 0 : i64, scratch_operands = 0 : i64, tpu.core_type = #tpu.core_type<tc>, window_params = [{transform_indices = @transform_0, window_bounds = array<i64: 1, 4, 256>}, {pipeline_mode = #tpu.pipeline_mode<synchronous>, transform_indices = @transform_1, window_bounds = array<i64: 9, 8, 4>}, {pipeline_mode = #tpu.pipeline_mode<synchronous>, transform_indices = @transform_2, window_bounds = array<i64: 8, 1>}, {transform_indices = @transform_3, window_bounds = array<i64: 1, 8, 256>}]} {
    %c0 = arith.constant 0 : index
    %c0_0 = arith.constant 0 : index
    %c0_1 = arith.constant 0 : index
    %0 = vector.load %arg1[%c0, %c0_0, %c0_1] : memref<1x4x256xf32, #tpu.memory_space<vmem>>, vector<1x4x256xf32>
    %1 = vector.shape_cast %0 : vector<1x4x256xf32> to vector<4x256xf32>
    %2 = tpu.iota {dimensions = array<i32: 1>} : vector<1x256xi32>
    %3 = arith.sitofp %2 : vector<1x256xi32> to vector<1x256xf32>
    %cst = arith.constant 5.000000e-01 : f32
    %4 = vector.broadcast %cst : f32 to vector<1x256xf32>
    %5 = arith.addf %3, %4 : vector<1x256xf32>
    %cst_2 = arith.constant 6.250000e-02 : f32
    %6 = vector.broadcast %cst_2 : f32 to vector<1x256xf32>
    %7 = arith.mulf %5, %6 : vector<1x256xf32>
    %8 = math.floor %7 : vector<1x256xf32>
    %cst_3 = arith.constant 1.600000e+01 : f32
    %9 = vector.broadcast %cst_3 : f32 to vector<1x256xf32>
    %10 = arith.mulf %8, %9 : vector<1x256xf32>
    %11 = arith.subf %3, %10 : vector<1x256xf32>
    %cst_4 = arith.constant 1.000000e+00 : f32
    %12 = vector.broadcast %cst_4 : f32 to vector<1x256xf32>
    %cst_5 = arith.constant 5.000000e-01 : f32
    %13 = vector.broadcast %cst_5 : f32 to vector<1x256xf32>
    %14 = arith.cmpf oge, %8, %13 : vector<1x256xf32>
    %15 = arith.extui %14 : vector<1x256xi1> to vector<1x256xi32>
    %16 = arith.sitofp %15 : vector<1x256xi32> to vector<1x256xf32>
    %cst_6 = arith.constant 1.450000e+01 : f32
    %17 = vector.broadcast %cst_6 : f32 to vector<1x256xf32>
    %18 = arith.cmpf ole, %8, %17 : vector<1x256xf32>
    %19 = arith.extui %18 : vector<1x256xi1> to vector<1x256xi32>
    %20 = arith.sitofp %19 : vector<1x256xi32> to vector<1x256xf32>
    %cst_7 = arith.constant 5.000000e-01 : f32
    %21 = vector.broadcast %cst_7 : f32 to vector<1x256xf32>
    %22 = arith.cmpf oge, %11, %21 : vector<1x256xf32>
    %23 = arith.extui %22 : vector<1x256xi1> to vector<1x256xi32>
    %24 = arith.sitofp %23 : vector<1x256xi32> to vector<1x256xf32>
    %cst_8 = arith.constant 1.450000e+01 : f32
    %25 = vector.broadcast %cst_8 : f32 to vector<1x256xf32>
    %26 = arith.cmpf ole, %11, %25 : vector<1x256xf32>
    %27 = arith.extui %26 : vector<1x256xi1> to vector<1x256xi32>
    %28 = arith.sitofp %27 : vector<1x256xi32> to vector<1x256xf32>
    %cst_9 = arith.constant 0.000000e+00 : f32
    %29 = vector.broadcast %cst_9 : f32 to vector<8x256xf32>
    %c17_i32 = arith.constant 17 : i32
    %30 = tpu.dynamic_rotate %1 by %c17_i32 dim 1 : vector<4x256xf32>, i32 -> vector<4x256xf32>
    %31 = arith.mulf %16, %24 : vector<1x256xf32>
    %32 = vector.broadcast %31 : vector<1x256xf32> to vector<4x256xf32>
    %33 = arith.mulf %30, %32 : vector<4x256xf32>
    %c0_10 = arith.constant 0 : index
    %c0_11 = arith.constant 0 : index
    %c0_12 = arith.constant 0 : index
    %34 = vector.load %arg2[%c0_10, %c0_11, %c0_12] : memref<9x8x4xf32, #tpu.memory_space<vmem>>, vector<1x8x4xf32>
    %35 = vector.shape_cast %34 : vector<1x8x4xf32> to vector<8x4xf32>
    %cst_13 = arith.constant dense<0.000000e+00> : vector<8x256xf32>
    %36 = tpu.matmul %35, %33, %cst_13 {dimension_numbers = #tpu.dot_dimension_numbers<[1], [0], [0], [1], [0, 0, 1, 1], [], []>} : vector<8x4xf32>, vector<4x256xf32>, vector<8x256xf32> -> vector<8x256xf32>
    %37 = arith.addf %29, %36 : vector<8x256xf32>
    %c16_i32 = arith.constant 16 : i32
    %38 = tpu.dynamic_rotate %1 by %c16_i32 dim 1 : vector<4x256xf32>, i32 -> vector<4x256xf32>
    %39 = arith.mulf %16, %12 : vector<1x256xf32>
    %40 = vector.broadcast %39 : vector<1x256xf32> to vector<4x256xf32>
    %41 = arith.mulf %38, %40 : vector<4x256xf32>
    %c1 = arith.constant 1 : index
    %c0_14 = arith.constant 0 : index
    %c0_15 = arith.constant 0 : index
    %42 = vector.load %arg2[%c1, %c0_14, %c0_15] : memref<9x8x4xf32, #tpu.memory_space<vmem>>, vector<1x8x4xf32>
    %43 = vector.shape_cast %42 : vector<1x8x4xf32> to vector<8x4xf32>
    %cst_16 = arith.constant dense<0.000000e+00> : vector<8x256xf32>
    %44 = tpu.matmul %43, %41, %cst_16 {dimension_numbers = #tpu.dot_dimension_numbers<[1], [0], [0], [1], [0, 0, 1, 1], [], []>} : vector<8x4xf32>, vector<4x256xf32>, vector<8x256xf32> -> vector<8x256xf32>
    %45 = arith.addf %37, %44 : vector<8x256xf32>
    %c15_i32 = arith.constant 15 : i32
    %46 = tpu.dynamic_rotate %1 by %c15_i32 dim 1 : vector<4x256xf32>, i32 -> vector<4x256xf32>
    %47 = arith.mulf %16, %28 : vector<1x256xf32>
    %48 = vector.broadcast %47 : vector<1x256xf32> to vector<4x256xf32>
    %49 = arith.mulf %46, %48 : vector<4x256xf32>
    %c2 = arith.constant 2 : index
    %c0_17 = arith.constant 0 : index
    %c0_18 = arith.constant 0 : index
    %50 = vector.load %arg2[%c2, %c0_17, %c0_18] : memref<9x8x4xf32, #tpu.memory_space<vmem>>, vector<1x8x4xf32>
    %51 = vector.shape_cast %50 : vector<1x8x4xf32> to vector<8x4xf32>
    %cst_19 = arith.constant dense<0.000000e+00> : vector<8x256xf32>
    %52 = tpu.matmul %51, %49, %cst_19 {dimension_numbers = #tpu.dot_dimension_numbers<[1], [0], [0], [1], [0, 0, 1, 1], [], []>} : vector<8x4xf32>, vector<4x256xf32>, vector<8x256xf32> -> vector<8x256xf32>
    %53 = arith.addf %45, %52 : vector<8x256xf32>
    %c1_i32 = arith.constant 1 : i32
    %54 = tpu.dynamic_rotate %1 by %c1_i32 dim 1 : vector<4x256xf32>, i32 -> vector<4x256xf32>
    %55 = arith.mulf %12, %24 : vector<1x256xf32>
    %56 = vector.broadcast %55 : vector<1x256xf32> to vector<4x256xf32>
    %57 = arith.mulf %54, %56 : vector<4x256xf32>
    %c3 = arith.constant 3 : index
    %c0_20 = arith.constant 0 : index
    %c0_21 = arith.constant 0 : index
    %58 = vector.load %arg2[%c3, %c0_20, %c0_21] : memref<9x8x4xf32, #tpu.memory_space<vmem>>, vector<1x8x4xf32>
    %59 = vector.shape_cast %58 : vector<1x8x4xf32> to vector<8x4xf32>
    %cst_22 = arith.constant dense<0.000000e+00> : vector<8x256xf32>
    %60 = tpu.matmul %59, %57, %cst_22 {dimension_numbers = #tpu.dot_dimension_numbers<[1], [0], [0], [1], [0, 0, 1, 1], [], []>} : vector<8x4xf32>, vector<4x256xf32>, vector<8x256xf32> -> vector<8x256xf32>
    %61 = arith.addf %53, %60 : vector<8x256xf32>
    %c4 = arith.constant 4 : index
    %c0_23 = arith.constant 0 : index
    %c0_24 = arith.constant 0 : index
    %62 = vector.load %arg2[%c4, %c0_23, %c0_24] : memref<9x8x4xf32, #tpu.memory_space<vmem>>, vector<1x8x4xf32>
    %63 = vector.shape_cast %62 : vector<1x8x4xf32> to vector<8x4xf32>
    %cst_25 = arith.constant dense<0.000000e+00> : vector<8x256xf32>
    %64 = tpu.matmul %63, %1, %cst_25 {dimension_numbers = #tpu.dot_dimension_numbers<[1], [0], [0], [1], [0, 0, 1, 1], [], []>} : vector<8x4xf32>, vector<4x256xf32>, vector<8x256xf32> -> vector<8x256xf32>
    %65 = arith.addf %61, %64 : vector<8x256xf32>
    %c255_i32 = arith.constant 255 : i32
    %66 = tpu.dynamic_rotate %1 by %c255_i32 dim 1 : vector<4x256xf32>, i32 -> vector<4x256xf32>
    %67 = arith.mulf %12, %28 : vector<1x256xf32>
    %68 = vector.broadcast %67 : vector<1x256xf32> to vector<4x256xf32>
    %69 = arith.mulf %66, %68 : vector<4x256xf32>
    %c5 = arith.constant 5 : index
    %c0_26 = arith.constant 0 : index
    %c0_27 = arith.constant 0 : index
    %70 = vector.load %arg2[%c5, %c0_26, %c0_27] : memref<9x8x4xf32, #tpu.memory_space<vmem>>, vector<1x8x4xf32>
    %71 = vector.shape_cast %70 : vector<1x8x4xf32> to vector<8x4xf32>
    %cst_28 = arith.constant dense<0.000000e+00> : vector<8x256xf32>
    %72 = tpu.matmul %71, %69, %cst_28 {dimension_numbers = #tpu.dot_dimension_numbers<[1], [0], [0], [1], [0, 0, 1, 1], [], []>} : vector<8x4xf32>, vector<4x256xf32>, vector<8x256xf32> -> vector<8x256xf32>
    %73 = arith.addf %65, %72 : vector<8x256xf32>
    %c241_i32 = arith.constant 241 : i32
    %74 = tpu.dynamic_rotate %1 by %c241_i32 dim 1 : vector<4x256xf32>, i32 -> vector<4x256xf32>
    %75 = arith.mulf %20, %24 : vector<1x256xf32>
    %76 = vector.broadcast %75 : vector<1x256xf32> to vector<4x256xf32>
    %77 = arith.mulf %74, %76 : vector<4x256xf32>
    %c6 = arith.constant 6 : index
    %c0_29 = arith.constant 0 : index
    %c0_30 = arith.constant 0 : index
    %78 = vector.load %arg2[%c6, %c0_29, %c0_30] : memref<9x8x4xf32, #tpu.memory_space<vmem>>, vector<1x8x4xf32>
    %79 = vector.shape_cast %78 : vector<1x8x4xf32> to vector<8x4xf32>
    %cst_31 = arith.constant dense<0.000000e+00> : vector<8x256xf32>
    %80 = tpu.matmul %79, %77, %cst_31 {dimension_numbers = #tpu.dot_dimension_numbers<[1], [0], [0], [1], [0, 0, 1, 1], [], []>} : vector<8x4xf32>, vector<4x256xf32>, vector<8x256xf32> -> vector<8x256xf32>
    %81 = arith.addf %73, %80 : vector<8x256xf32>
    %c240_i32 = arith.constant 240 : i32
    %82 = tpu.dynamic_rotate %1 by %c240_i32 dim 1 : vector<4x256xf32>, i32 -> vector<4x256xf32>
    %83 = arith.mulf %20, %12 : vector<1x256xf32>
    %84 = vector.broadcast %83 : vector<1x256xf32> to vector<4x256xf32>
    %85 = arith.mulf %82, %84 : vector<4x256xf32>
    %c7 = arith.constant 7 : index
    %c0_32 = arith.constant 0 : index
    %c0_33 = arith.constant 0 : index
    %86 = vector.load %arg2[%c7, %c0_32, %c0_33] : memref<9x8x4xf32, #tpu.memory_space<vmem>>, vector<1x8x4xf32>
    %87 = vector.shape_cast %86 : vector<1x8x4xf32> to vector<8x4xf32>
    %cst_34 = arith.constant dense<0.000000e+00> : vector<8x256xf32>
    %88 = tpu.matmul %87, %85, %cst_34 {dimension_numbers = #tpu.dot_dimension_numbers<[1], [0], [0], [1], [0, 0, 1, 1], [], []>} : vector<8x4xf32>, vector<4x256xf32>, vector<8x256xf32> -> vector<8x256xf32>
    %89 = arith.addf %81, %88 : vector<8x256xf32>
    %c239_i32 = arith.constant 239 : i32
    %90 = tpu.dynamic_rotate %1 by %c239_i32 dim 1 : vector<4x256xf32>, i32 -> vector<4x256xf32>
    %91 = arith.mulf %20, %28 : vector<1x256xf32>
    %92 = vector.broadcast %91 : vector<1x256xf32> to vector<4x256xf32>
    %93 = arith.mulf %90, %92 : vector<4x256xf32>
    %c8 = arith.constant 8 : index
    %c0_35 = arith.constant 0 : index
    %c0_36 = arith.constant 0 : index
    %94 = vector.load %arg2[%c8, %c0_35, %c0_36] : memref<9x8x4xf32, #tpu.memory_space<vmem>>, vector<1x8x4xf32>
    %95 = vector.shape_cast %94 : vector<1x8x4xf32> to vector<8x4xf32>
    %cst_37 = arith.constant dense<0.000000e+00> : vector<8x256xf32>
    %96 = tpu.matmul %95, %93, %cst_37 {dimension_numbers = #tpu.dot_dimension_numbers<[1], [0], [0], [1], [0, 0, 1, 1], [], []>} : vector<8x4xf32>, vector<4x256xf32>, vector<8x256xf32> -> vector<8x256xf32>
    %97 = arith.addf %89, %96 : vector<8x256xf32>
    %c0_38 = arith.constant 0 : index
    %c0_39 = arith.constant 0 : index
    %98 = vector.load %arg3[%c0_38, %c0_39] : memref<8x1xf32, #tpu.memory_space<vmem>>, vector<8x1xf32>
    %99 = vector.broadcast %98 : vector<8x1xf32> to vector<8x256xf32>
    %100 = arith.addf %97, %99 : vector<8x256xf32>
    %cst_40 = arith.constant 0.000000e+00 : f32
    %101 = vector.broadcast %cst_40 : f32 to vector<8x256xf32>
    %102 = arith.cmpf ogt, %100, %101 : vector<8x256xf32>
    %cst_41 = arith.constant 0.00999999977 : f32
    %103 = vector.broadcast %cst_41 : f32 to vector<8x256xf32>
    %104 = arith.mulf %103, %100 : vector<8x256xf32>
    %105 = arith.select %102, %100, %104 : vector<8x256xi1>, vector<8x256xf32>
    %c0_42 = arith.constant 0 : index
    %c0_43 = arith.constant 0 : index
    %c0_44 = arith.constant 0 : index
    %106 = vector.load %arg4[%c0_42, %c0_43, %c0_44] : memref<1x8x256xf32, #tpu.memory_space<vmem>>, vector<1x8x256xf32>
    %107 = vector.shape_cast %106 : vector<1x8x256xf32> to vector<8x256xf32>
    %108 = vector.shape_cast %105 : vector<8x256xf32> to vector<1x8x256xf32>
    tpu.vector_store %arg4[%c0_42, %c0_43, %c0_44], %108 {strides = array<i32>} : memref<1x8x256xf32, #tpu.memory_space<vmem>>, vector<1x8x256xf32>,
    return
  }
  func.func @transform_0(%arg0: i32) -> (i32, i32, i32) {
    %c0_i32 = arith.constant 0 : i32
    %c0_i32_0 = arith.constant 0 : i32
    %c0_i32_1 = arith.constant 0 : i32
    return %arg0, %c0_i32, %c0_i32_0 : i32, i32, i32
  }
  func.func @transform_1(%arg0: i32) -> (i32, i32, i32) {
    %c0_i32 = arith.constant 0 : i32
    %c0_i32_0 = arith.constant 0 : i32
    %c0_i32_1 = arith.constant 0 : i32
    %c0_i32_2 = arith.constant 0 : i32
    return %c0_i32, %c0_i32_0, %c0_i32_1 : i32, i32, i32
  }
  func.func @transform_2(%arg0: i32) -> (i32, i32) {
    %c0_i32 = arith.constant 0 : i32
    %c0_i32_0 = arith.constant 0 : i32
    %c0_i32_1 = arith.constant 0 : i32
    return %c0_i32, %c0_i32_0 : i32, i32
  }
  func.func @transform_3(%arg0: i32) -> (i32, i32, i32) {
    %c0_i32 = arith.constant 0 : i32
    %c0_i32_0 = arith.constant 0 : i32
    %c0_i32_1 = arith.constant 0 : i32
    return %arg0, %c0_i32, %c0_i32_0 : i32, i32, i32
  }
}

</mosaic_0001>

<llo_original>
// kernel: convolution_layer.1
$region0: #{convolution_layer.1}
  #allocation0 [shape = 'u32[]', space=smem, size = 0x4, offset = 0x4, fixed_abs, tag = 'smem constant byte address 0x4 - core index']
  #allocation1 [shape = 'u32[72,128]{1,0:T(1,128)}', space=vmem, size = 0x9000, scoped, tag = 'internal scratch']
  %s0 = inlined_call_operand.vmem [shape: f32[2,4,256], index: 0, kind: input, shape index: {}]
  %s1 = inlined_call_operand.vmem [shape: f32[9,8,4], index: 1, kind: input, shape index: {}]
  %s2 = inlined_call_operand.vmem [shape: f32[8,1], index: 2, kind: input, shape index: {}]
  %s3 = inlined_call_operand.vmem [shape: f32[2,8,256], index: 3, kind: output, shape index: {}]
  %s4 = sld [smem:[#allocation0]]
  $region45: #{convolution_layer.1} parent=0
    _
  %s6 = ssub.s32 1, %s4
  %s7 = scalar_select 0, %s6, %s4
  loop: start=0, step=1, limit=4
  $region2: #{convolution_layer.1} parent=0 // loop_pre_header
    _
  $region3: #{convolution_layer.1} parent=0 // loop_header
    %s9 = sphi 0, %s13
    %p10 = scmp.ge.s32.totalorder %s9, 4
    %s19 = sphi 0, %s21
    %s22 = sphi 0, %s19
    %s23 = sphi 0, %s22
    %s39 = sphi 0, %s23
    %s43 = sphi 0, %s43
    %s45 = sphi 0, %s43
    %s46 = sphi 0, %s45
    %s60 = sphi 0, %s46
    %s64 = sphi 0, %s64
    %s66 = sphi 0, %s64
    %s67 = sphi 0, %s66
    %s81 = sphi 0, %s67
    %s87 = sphi 0, %s89
    %s90 = sphi 0, %s87
    %s91 = sphi 0, %s90
    %s107 = sphi 0, %s91
  $region4: #{convolution_layer.1} parent=0 // loop_header_branch
    %12 = sbr.rel (%p10) target = $region8
  $region5: #{convolution_layer.1} parent=0 // loop_body
    %s14 = ssub.s32 %s9, 1
    %s15 = ssub.s32 %s9, 2
    %s16 = sadd.s32 %s9, 1
    %s17 = ssub.s32 %s9, %s16
    %p18 = scmp.eq.s32.totalorder %s17, 0
    %s20 = sadd.s32 %s19, 1
    %s21 = scalar_select %p18, %s19, %s20
    %p24 = pneg %p18
    %p25 = scmp.eq.s32.totalorder %s9, 1
    %p26 = por %p24, %p25
    %p27 = scmp.ne.s32.totalorder %s19, %s22
    %p28 = scmp.eq.s32.totalorder %s9, 0
    %p29 = por %p27, %p28
    %p30 = scmp.ne.s32.totalorder %s19, %s22
    %p31 = scmp.eq.s32.totalorder %s14, 1
    %p32 = por %p30, %p31
    %p33 = scmp.ne.s32.totalorder %s22, %s23
    %p34 = scmp.eq.s32.totalorder %s14, 0
    %p35 = por %p33, %p34
    %p36 = scmp.ne.s32.totalorder %s22, %s23
    %p37 = scmp.eq.s32.totalorder %s15, 1
    %p38 = por %p36, %p37
    %p40 = scmp.ne.s32.totalorder %s23, %s39
    %p41 = scmp.eq.s32.totalorder %s15, 0
    %p42 = por %p40, %p41
    %s44 = sadd.s32 %s43, 1
    %p47 = scmp.eq.s32.totalorder %s9, 1
    %p48 = scmp.ne.s32.totalorder %s43, %s45
    %p49 = scmp.eq.s32.totalorder %s9, 0
    %p50 = por %p48, %p49
    %p51 = scmp.ne.s32.totalorder %s43, %s45
    %p52 = scmp.eq.s32.totalorder %s14, 1
    %p53 = por %p51, %p52
    %p54 = scmp.ne.s32.totalorder %s45, %s46
    %p55 = scmp.eq.s32.totalorder %s14, 0
    %p56 = por %p54, %p55
    %p57 = scmp.ne.s32.totalorder %s45, %s46
    %p58 = scmp.eq.s32.totalorder %s15, 1
    %p59 = por %p57, %p58
    %p61 = scmp.ne.s32.totalorder %s46, %s60
    %p62 = scmp.eq.s32.totalorder %s15, 0
    %p63 = por %p61, %p62
    %s65 = sadd.s32 %s64, 1
    %p68 = scmp.eq.s32.totalorder %s9, 1
    %p69 = scmp.ne.s32.totalorder %s64, %s66
    %p70 = scmp.eq.s32.totalorder %s9, 0
    %p71 = por %p69, %p70
    %p72 = scmp.ne.s32.totalorder %s64, %s66
    %p73 = scmp.eq.s32.totalorder %s14, 1
    %p74 = por %p72, %p73
    %p75 = scmp.ne.s32.totalorder %s66, %s67
    %p76 = scmp.eq.s32.totalorder %s14, 0
    %p77 = por %p75, %p76
    %p78 = scmp.ne.s32.totalorder %s66, %s67
    %p79 = scmp.eq.s32.totalorder %s15, 1
    %p80 = por %p78, %p79
    %p82 = scmp.ne.s32.totalorder %s67, %s81
    %p83 = scmp.eq.s32.totalorder %s15, 0
    %p84 = por %p82, %p83
    %s85 = ssub.s32 %s9, %s16
    %p86 = scmp.eq.s32.totalorder %s85, 0
    %s88 = sadd.s32 %s87, 1
    %s89 = scalar_select %p86, %s87, %s88
    %p92 = pneg %p86
    %p93 = scmp.eq.s32.totalorder %s9, 1
    %p94 = por %p92, %p93
    %p95 = scmp.ne.s32.totalorder %s87, %s90
    %p96 = scmp.eq.s32.totalorder %s9, 0
    %p97 = por %p95, %p96
    %p98 = scmp.ne.s32.totalorder %s87, %s90
    %p99 = scmp.eq.s32.totalorder %s14, 1
    %p100 = por %p98, %p99
    %p101 = scmp.ne.s32.totalorder %s90, %s91
    %p102 = scmp.eq.s32.totalorder %s14, 0
    %p103 = por %p101, %p102
    %p104 = scmp.ne.s32.totalorder %s90, %s91
    %p105 = scmp.eq.s32.totalorder %s15, 1
    %p106 = por %p104, %p105
    %p108 = scmp.ne.s32.totalorder %s91, %s107
    %p109 = scmp.eq.s32.totalorder %s15, 0
    %p110 = por %p108, %p109
    %p111 = scmp.le.s32.totalorder 1, %s9
    %p112 = scmp.lt.s32.totalorder %s9, 3
    %p113 = pnand %p111, %p112
    %p114 = pneg %p113
    // Predicated region
    $region9: #{convolution_layer.1} parent=5 // pred_check
      _
    $region10: #{convolution_layer.1} parent=5 // pred_check_branch
      %116 = sbr.rel (%p113) target = $region12
    $region11: #{convolution_layer.1} parent=5 // pred_region
      %s117 = ssub.s32 %s9, 1
      // Predicated region
      $region13: #{convolution_layer.1} parent=11 // pred_check
        %p118 = pneg %p56
      $region14: #{convolution_layer.1} parent=11 // pred_check_branch
        %120 = sbr.rel (%p118) target = $region16
      $region15: #{convolution_layer.1} parent=11 // pred_region
        _
      $region16: #{convolution_layer.1} parent=11 // pred_fallthru
        _
      // Predicated region
      $region17: #{convolution_layer.1} parent=11 // pred_check
        %p121 = pneg %p77
      $region18: #{convolution_layer.1} parent=11 // pred_check_branch
        %123 = sbr.rel (%p121) target = $region20
      $region19: #{convolution_layer.1} parent=11 // pred_region
        _
      $region20: #{convolution_layer.1} parent=11 // pred_fallthru
        _
    $region12: #{convolution_layer.1} parent=5 // pred_fallthru
      _
    %p124 = scmp.lt.s32.totalorder %s9, 2
    // Predicated region
    $region21: #{convolution_layer.1} parent=5 // pred_check
      %p125 = pneg %p124
    $region22: #{convolution_layer.1} parent=5 // pred_check_branch
      %127 = sbr.rel (%p125) target = $region24
    $region23: #{convolution_layer.1} parent=5 // pred_region
      // Predicated region
      $region25: #{convolution_layer.1} parent=23 // pred_check
        %p128 = pneg %p29
      $region26: #{convolution_layer.1} parent=23 // pred_check_branch
        %130 = sbr.rel (%p128) target = $region28
      $region27: #{convolution_layer.1} parent=23 // pred_region
        %p131 = scmp.lt.s32.totalorder %s9, 1
        %s132 = scalar_select %p131, %s9, 1
        %s133 = smul.addr %s132, 2
        %s134 = smul.addr %s133, 4
        %s135 = scalar_lea.vmem %s0, %s134
      $region28: #{convolution_layer.1} parent=23 // pred_fallthru
        _
    $region24: #{convolution_layer.1} parent=5 // pred_fallthru
      _
    %p136 = scmp.le.s32.totalorder 1, %s9
    %p137 = scmp.lt.s32.totalorder %s9, 3
    %p138 = pnand %p136, %p137
    %p139 = pneg %p138
    // Predicated region
    $region29: #{convolution_layer.1} parent=5 // pred_check
      _
    $region30: #{convolution_layer.1} parent=5 // pred_check_branch
      %141 = sbr.rel (%p138) target = $region32
    $region31: #{convolution_layer.1} parent=5 // pred_region
      %s142 = ssub.s32 %s9, 1
      %p143 = scmp.lt.s32.totalorder %s14, 1
      %s144 = scalar_select %p143, %s14, 1
      %s145 = smul.addr %s144, 2
      %s146 = smul.addr %s145, 4
      %s147 = scalar_lea.vmem %s0, %s146
      %p148 = pneg %p35
      %p149 = pneg %p32
      %p150 = pneg %p56
      %p151 = pneg %p53
      %p152 = pneg %p77
      %p153 = pneg %p74
      %p154 = pneg %p103
      %p155 = pneg %p100
      %p156 = scmp.lt.s32.totalorder %s14, 1
      %s157 = scalar_select %p156, %s14, 1
      %s158 = smul.addr %s157, 2
      %s159 = smul.addr %s158, 8
      %s160 = scalar_lea.vmem %s3, %s159
      %p161 = scmp.lt.s32.totalorder %s14, 1
      %s162 = scalar_select %p161, %s14, 1
      %s163 = smul.addr %s162, 2
      %s164 = smul.addr %s163, 4
      %s165 = scalar_lea.vmem %s0, %s164
      %p166 = scmp.lt.s32.totalorder %s14, 1
      %s167 = scalar_select %p166, %s14, 1
      %s168 = smul.addr %s167, 2
      %s169 = smul.addr %s168, 8
      %s170 = scalar_lea.vmem %s3, %s169
      %v171 = vld [vmem:[%s165] sm:$0xff]
      %v172 = vlaneseq
      %v173 = vand.u32 %v172, 127
      %v174 = vadd.s32 %v173, 128
      %v175 = vcvt.s32.f32 %v173
      %v176 = vcvt.s32.f32 %v174
      %v177 = vadd.f32 %v175, 0.5
      %v178 = vadd.f32 %v176, 0.5
      %v179 = vmul.f32 %v177, 0.0625
      %v180 = vmul.f32 %v178, 0.0625
      %v181 = vfloor.f32 %v179
      %v182 = vfloor.f32 %v180
      %v183 = vmul.f32 %v181, 16.0
      %v184 = vmul.f32 %v182, 16.0
      %v185 = vsub.f32 %v175, %v183
      %v186 = vsub.f32 %v176, %v184
      %vm187 = vcmp.ge.f32.partialorder %v181, 0.5
      %vm188 = vcmp.ge.f32.partialorder %v182, 0.5
      %v189 = vsel %vm187, 1, 0
      %v190 = vsel %vm188, 1, 0
      %v191 = vcvt.s32.f32 %v189
      %v192 = vcvt.s32.f32 %v190
      %vm193 = vcmp.le.f32.partialorder %v181, 14.5
      %vm194 = vcmp.le.f32.partialorder %v182, 14.5
      %v195 = vsel %vm193, 1, 0
      %v196 = vsel %vm194, 1, 0
      %v197 = vcvt.s32.f32 %v195
      %v198 = vcvt.s32.f32 %v196
      %vm199 = vcmp.ge.f32.partialorder %v185, 0.5
      %vm200 = vcmp.ge.f32.partialorder %v186, 0.5
      %v201 = vsel %vm199, 1, 0
      %v202 = vsel %vm200, 1, 0
      %v203 = vcvt.s32.f32 %v201
      %v204 = vcvt.s32.f32 %v202
      %vm205 = vcmp.le.f32.partialorder %v185, 14.5
      %vm206 = vcmp.le.f32.partialorder %v186, 14.5
      %v207 = vsel %vm205, 1, 0
      %v208 = vsel %vm206, 1, 0
      %v209 = vcvt.s32.f32 %v207
      %v210 = vcvt.s32.f32 %v208
      %212 = vst [vmem:[#allocation1] ss:$2 sm:$0xff] %v171
      %v213 = vld.sshfl [vmem:[#allocation1] sm:$0xff pattern:$0x75316420]
      %v214 = vld.sshfl [vmem:[#allocation1 + $0x8] sm:$0xff pattern:$0x75316420]
      %217 = vrot.lane.b32.xlu0 %v213, 17
      %v218 = vpop.permute.xlu0 %217
      %219 = vrot.lane.b32.xlu0 %v214, 17
      %v220 = vpop.permute.xlu0 %219
      %vm221 = vcmp.lt.s32.totalorder %v173, 17
      %v222 = vsel %vm221, %v218, %v220
      %v223 = vsel %vm221, %v220, %v218
      %v224 = vmul.f32 %v191, %v203
      %v225 = vmul.f32 %v192, %v204
      %v226 = vmul.f32 %v223, %v224
      %v227 = vmul.f32 %v222, %v225
      %v228 = vld [vmem:[%s1] sm:$0xff]
      %229 = vst [vmem:[#allocation1] ss:$2 sm:$0xff] %v171
      %v230 = vld.sshfl [vmem:[#allocation1] sm:$0xff pattern:$0x75316420]
      %v231 = vld.sshfl [vmem:[#allocation1 + $0x8] sm:$0xff pattern:$0x75316420]
      %234 = vrot.lane.b32.xlu0 %v230, 16
      %v235 = vpop.permute.xlu0 %234
      %236 = vrot.lane.b32.xlu0 %v231, 16
      %v237 = vpop.permute.xlu0 %236
      %vm238 = vcmp.lt.s32.totalorder %v173, 16
      %v239 = vsel %vm238, %v235, %v237
      %v240 = vsel %vm238, %v237, %v235
      %v241 = vmul.f32 %v240, %v191
      %v242 = vmul.f32 %v239, %v192
      %s243 = scalar_lea.vmem %s1, 8
      %v244 = vld [vmem:[%s243] sm:$0xff]
      %vm245 = vcmask 31744
      %v247 = vsel %vm245, %v244, 0
      %vm249 = vcmask 1043456
      %v251 = vsel %vm249, %v241, 0
      %v254 = vsel %vm249, %v242, 0
      %256 = vmatpush.msra.mxu0 0.0
      %257 = vmatpush.msra.mxu0 0.0
      %258 = vmatpush.msra.mxu0 0.0
      %259 = vmatpush.msra.mxu0 0.0
      %260 = vmatpush.msra.mxu0 0.0
      %261 = vmatpush.msra.mxu0 0.0
      %262 = vmatpush.msra.mxu0 0.0
      %263 = vmatpush.msra.mxu0 0.0
      %264 = vmatpush.msra.mxu0 0.0
      %265 = vmatpush.msra.mxu0 0.0
      %266 = vmatpush.msra.mxu0 0.0
      %267 = vmatpush.msra.mxu0 0.0
      %268 = vmatpush.msra.mxu0 0.0
      %269 = vmatpush.msra.mxu0 0.0
      %270 = vmatpush.msra.mxu0 0.0
      %271 = vmatpush.msra.mxu0 %v251
      %272 = vmatmul.f32.gmra.mxu0 %v247
      %v273 = vpop.f32.mrf.mxu0
      %v274 = vadd.f32 0.0, %v273
      %275 = vdwg.mxu0
      %276 = vmatpush.msra.mxu0 0.0
      %277 = vmatpush.msra.mxu0 0.0
      %278 = vmatpush.msra.mxu0 0.0
      %279 = vmatpush.msra.mxu0 0.0
      %280 = vmatpush.msra.mxu0 0.0
      %281 = vmatpush.msra.mxu0 0.0
      %282 = vmatpush.msra.mxu0 0.0
      %283 = vmatpush.msra.mxu0 0.0
      %284 = vmatpush.msra.mxu0 0.0
      %285 = vmatpush.msra.mxu0 0.0
      %286 = vmatpush.msra.mxu0 0.0
      %287 = vmatpush.msra.mxu0 0.0
      %288 = vmatpush.msra.mxu0 0.0
      %289 = vmatpush.msra.mxu0 0.0
      %290 = vmatpush.msra.mxu0 0.0
      %291 = vmatpush.msra.mxu0 %v254
      %292 = vmatmul.f32.gmra.mxu0 %v247
      %v293 = vpop.f32.mrf.mxu0
      %v294 = vadd.f32 0.0, %v293
      %295 = vdwg.mxu0
      %v297 = vsel %vm245, %v228, 0
      %v300 = vsel %vm249, %v226, 0
      %v303 = vsel %vm249, %v227, 0
      %305 = vmatpush.msra.mxu0 0.0
      %306 = vmatpush.msra.mxu0 0.0
      %307 = vmatpush.msra.mxu0 0.0
      %308 = vmatpush.msra.mxu0 0.0
      %309 = vmatpush.msra.mxu0 0.0
      %310 = vmatpush.msra.mxu0 0.0
      %311 = vmatpush.msra.mxu0 0.0
      %312 = vmatpush.msra.mxu0 0.0
      %313 = vmatpush.msra.mxu0 0.0
      %314 = vmatpush.msra.mxu0 0.0
      %315 = vmatpush.msra.mxu0 0.0
      %316 = vmatpush.msra.mxu0 0.0
      %317 = vmatpush.msra.mxu0 0.0
      %318 = vmatpush.msra.mxu0 0.0
      %319 = vmatpush.msra.mxu0 0.0
      %320 = vmatpush.msra.mxu0 %v300
      %321 = vmatmul.f32.gmra.mxu0 %v297
      %v322 = vpop.f32.mrf.mxu0
      %v323 = vadd.f32 %v274, %v322
      %324 = vdwg.mxu0
      %325 = vmatpush.msra.mxu0 0.0
      %326 = vmatpush.msra.mxu0 0.0
      %327 = vmatpush.msra.mxu0 0.0
      %328 = vmatpush.msra.mxu0 0.0
      %329 = vmatpush.msra.mxu0 0.0
      %330 = vmatpush.msra.mxu0 0.0
      %331 = vmatpush.msra.mxu0 0.0
      %332 = vmatpush.msra.mxu0 0.0
      %333 = vmatpush.msra.mxu0 0.0
      %334 = vmatpush.msra.mxu0 0.0
      %335 = vmatpush.msra.mxu0 0.0
      %336 = vmatpush.msra.mxu0 0.0
      %337 = vmatpush.msra.mxu0 0.0
      %338 = vmatpush.msra.mxu0 0.0
      %339 = vmatpush.msra.mxu0 0.0
      %340 = vmatpush.msra.mxu0 %v303
      %341 = vmatmul.f32.gmra.mxu0 %v297
      %v342 = vpop.f32.mrf.mxu0
      %v343 = vadd.f32 %v294, %v342
      %344 = vdwg.mxu0
      %345 = vst [vmem:[#allocation1] ss:$2 sm:$0xff] %v171
      %v346 = vld.sshfl [vmem:[#allocation1] sm:$0xff pattern:$0x75316420]
      %v347 = vld.sshfl [vmem:[#allocation1 + $0x8] sm:$0xff pattern:$0x75316420]
      %350 = vrot.lane.b32.xlu0 %v346, 15
      %v351 = vpop.permute.xlu0 %350
      %352 = vrot.lane.b32.xlu0 %v347, 15
      %v353 = vpop.permute.xlu0 %352
      %vm354 = vcmp.lt.s32.totalorder %v173, 15
      %v355 = vsel %vm354, %v351, %v353
      %v356 = vsel %vm354, %v353, %v351
      %v357 = vmul.f32 %v191, %v209
      %v358 = vmul.f32 %v192, %v210
      %v359 = vmul.f32 %v356, %v357
      %v360 = vmul.f32 %v355, %v358
      %s361 = scalar_lea.vmem %s1, 16
      %v362 = vld [vmem:[%s361] sm:$0xff]
      %v364 = vsel %vm245, %v362, 0
      %v367 = vsel %vm249, %v359, 0
      %v370 = vsel %vm249, %v360, 0
      %372 = vmatpush.msra.mxu0 0.0
      %373 = vmatpush.msra.mxu0 0.0
      %374 = vmatpush.msra.mxu0 0.0
      %375 = vmatpush.msra.mxu0 0.0
      %376 = vmatpush.msra.mxu0 0.0
      %377 = vmatpush.msra.mxu0 0.0
      %378 = vmatpush.msra.mxu0 0.0
      %379 = vmatpush.msra.mxu0 0.0
      %380 = vmatpush.msra.mxu0 0.0
      %381 = vmatpush.msra.mxu0 0.0
      %382 = vmatpush.msra.mxu0 0.0
      %383 = vmatpush.msra.mxu0 0.0
      %384 = vmatpush.msra.mxu0 0.0
      %385 = vmatpush.msra.mxu0 0.0
      %386 = vmatpush.msra.mxu0 0.0
      %387 = vmatpush.msra.mxu0 %v367
      %388 = vmatmul.f32.gmra.mxu0 %v364
      %v389 = vpop.f32.mrf.mxu0
      %v390 = vadd.f32 0.0, %v389
      %391 = vdwg.mxu0
      %392 = vmatpush.msra.mxu0 0.0
      %393 = vmatpush.msra.mxu0 0.0
      %394 = vmatpush.msra.mxu0 0.0
      %395 = vmatpush.msra.mxu0 0.0
      %396 = vmatpush.msra.mxu0 0.0
      %397 = vmatpush.msra.mxu0 0.0
      %398 = vmatpush.msra.mxu0 0.0
      %399 = vmatpush.msra.mxu0 0.0
      %400 = vmatpush.msra.mxu0 0.0
      %401 = vmatpush.msra.mxu0 0.0
      %402 = vmatpush.msra.mxu0 0.0
      %403 = vmatpush.msra.mxu0 0.0
      %404 = vmatpush.msra.mxu0 0.0
      %405 = vmatpush.msra.mxu0 0.0
      %406 = vmatpush.msra.mxu0 0.0
      %407 = vmatpush.msra.mxu0 %v370
      %408 = vmatmul.f32.gmra.mxu0 %v364
      %v409 = vpop.f32.mrf.mxu0
      %v410 = vadd.f32 0.0, %v409
      %411 = vdwg.mxu0
      %v412 = vadd.f32 %v323, %v390
      %v413 = vadd.f32 %v343, %v410
      %414 = vst [vmem:[#allocation1] ss:$2 sm:$0xff] %v171
      %v415 = vld.sshfl [vmem:[#allocation1] sm:$0xff pattern:$0x75316420]
      %v416 = vld.sshfl [vmem:[#allocation1 + $0x8] sm:$0xff pattern:$0x75316420]
      %419 = vrot.lane.b32.xlu0 %v415, 1
      %v420 = vpop.permute.xlu0 %419
      %421 = vrot.lane.b32.xlu0 %v416, 1
      %v422 = vpop.permute.xlu0 %421
      %vm423 = vcmp.lt.s32.totalorder %v173, 1
      %v424 = vsel %vm423, %v420, %v422
      %v425 = vsel %vm423, %v422, %v420
      %v426 = vmul.f32 %v425, %v203
      %v427 = vmul.f32 %v424, %v204
      %s428 = scalar_lea.vmem %s1, 24
      %v429 = vld [vmem:[%s428] sm:$0xff]
      %v431 = vsel %vm245, %v429, 0
      %v434 = vsel %vm249, %v426, 0
      %v437 = vsel %vm249, %v427, 0
      %439 = vmatpush.msra.mxu0 0.0
      %440 = vmatpush.msra.mxu0 0.0
      %441 = vmatpush.msra.mxu0 0.0
      %442 = vmatpush.msra.mxu0 0.0
      %443 = vmatpush.msra.mxu0 0.0
      %444 = vmatpush.msra.mxu0 0.0
      %445 = vmatpush.msra.mxu0 0.0
      %446 = vmatpush.msra.mxu0 0.0
      %447 = vmatpush.msra.mxu0 0.0
      %448 = vmatpush.msra.mxu0 0.0
      %449 = vmatpush.msra.mxu0 0.0
      %450 = vmatpush.msra.mxu0 0.0
      %451 = vmatpush.msra.mxu0 0.0
      %452 = vmatpush.msra.mxu0 0.0
      %453 = vmatpush.msra.mxu0 0.0
      %454 = vmatpush.msra.mxu0 %v434
      %455 = vmatmul.f32.gmra.mxu0 %v431
      %v456 = vpop.f32.mrf.mxu0
      %v457 = vadd.f32 0.0, %v456
      %458 = vdwg.mxu0
      %459 = vmatpush.msra.mxu0 0.0
      %460 = vmatpush.msra.mxu0 0.0
      %461 = vmatpush.msra.mxu0 0.0
      %462 = vmatpush.msra.mxu0 0.0
      %463 = vmatpush.msra.mxu0 0.0
      %464 = vmatpush.msra.mxu0 0.0
      %465 = vmatpush.msra.mxu0 0.0
      %466 = vmatpush.msra.mxu0 0.0
      %467 = vmatpush.msra.mxu0 0.0
      %468 = vmatpush.msra.mxu0 0.0
      %469 = vmatpush.msra.mxu0 0.0
      %470 = vmatpush.msra.mxu0 0.0
      %471 = vmatpush.msra.mxu0 0.0
      %472 = vmatpush.msra.mxu0 0.0
      %473 = vmatpush.msra.mxu0 0.0
      %474 = vmatpush.msra.mxu0 %v437
      %475 = vmatmul.f32.gmra.mxu0 %v431
      %v476 = vpop.f32.mrf.mxu0
      %v477 = vadd.f32 0.0, %v476
      %478 = vdwg.mxu0
      %v479 = vadd.f32 %v412, %v457
      %v480 = vadd.f32 %v413, %v477
      %s481 = scalar_lea.vmem %s1, 32
      %v482 = vld [vmem:[%s481] sm:$0xff]
      %483 = vst [vmem:[#allocation1] ss:$2 sm:$0xff] %v171
      %v484 = vld.sshfl [vmem:[#allocation1] sm:$0xff pattern:$0x75316420]
      %v485 = vld.sshfl [vmem:[#allocation1 + $0x8] sm:$0xff pattern:$0x75316420]
      %v487 = vsel %vm245, %v482, 0
      %v489 = vsel %vm249, %v484, 0
      %v491 = vsel %vm249, %v485, 0
      %493 = vmatpush.msra.mxu0 0.0
      %494 = vmatpush.msra.mxu0 0.0
      %495 = vmatpush.msra.mxu0 0.0
      %496 = vmatpush.msra.mxu0 0.0
      %497 = vmatpush.msra.mxu0 0.0
      %498 = vmatpush.msra.mxu0 0.0
      %499 = vmatpush.msra.mxu0 0.0
      %500 = vmatpush.msra.mxu0 0.0
      %501 = vmatpush.msra.mxu0 0.0
      %502 = vmatpush.msra.mxu0 0.0
      %503 = vmatpush.msra.mxu0 0.0
      %504 = vmatpush.msra.mxu0 0.0
      %505 = vmatpush.msra.mxu0 0.0
      %506 = vmatpush.msra.mxu0 0.0
      %507 = vmatpush.msra.mxu0 0.0
      %508 = vmatpush.msra.mxu0 %v489
      %509 = vmatmul.f32.gmra.mxu0 %v487
      %v510 = vpop.f32.mrf.mxu0
      %v511 = vadd.f32 0.0, %v510
      %512 = vdwg.mxu0
      %513 = vmatpush.msra.mxu0 0.0
      %514 = vmatpush.msra.mxu0 0.0
      %515 = vmatpush.msra.mxu0 0.0
      %516 = vmatpush.msra.mxu0 0.0
      %517 = vmatpush.msra.mxu0 0.0
      %518 = vmatpush.msra.mxu0 0.0
      %519 = vmatpush.msra.mxu0 0.0
      %520 = vmatpush.msra.mxu0 0.0
      %521 = vmatpush.msra.mxu0 0.0
      %522 = vmatpush.msra.mxu0 0.0
      %523 = vmatpush.msra.mxu0 0.0
      %524 = vmatpush.msra.mxu0 0.0
      %525 = vmatpush.msra.mxu0 0.0
      %526 = vmatpush.msra.mxu0 0.0
      %527 = vmatpush.msra.mxu0 0.0
      %528 = vmatpush.msra.mxu0 %v491
      %529 = vmatmul.f32.gmra.mxu0 %v487
      %v530 = vpop.f32.mrf.mxu0
      %v531 = vadd.f32 0.0, %v530
      %532 = vdwg.mxu0
      %v533 = vadd.f32 %v479, %v511
      %v534 = vadd.f32 %v480, %v531
      %535 = vst [vmem:[#allocation1] ss:$2 sm:$0xff] %v171
      %v536 = vld.sshfl [vmem:[#allocation1] sm:$0xff pattern:$0x75316420]
      %v537 = vld.sshfl [vmem:[#allocation1 + $0x8] sm:$0xff pattern:$0x75316420]
      %540 = vrot.lane.b32.xlu0 %v536, 127
      %v541 = vpop.permute.xlu0 %540
      %542 = vrot.lane.b32.xlu0 %v537, 127
      %v543 = vpop.permute.xlu0 %542
      %vm544 = vcmp.lt.s32.totalorder %v173, 127
      %v545 = vsel %vm544, %v541, %v543
      %v546 = vsel %vm544, %v543, %v541
      %v547 = vmul.f32 %v545, %v209
      %v548 = vmul.f32 %v546, %v210
      %s549 = scalar_lea.vmem %s1, 40
      %v550 = vld [vmem:[%s549] sm:$0xff]
      %v552 = vsel %vm245, %v550, 0
      %v555 = vsel %vm249, %v547, 0
      %v558 = vsel %vm249, %v548, 0
      %560 = vmatpush.msra.mxu0 0.0
      %561 = vmatpush.msra.mxu0 0.0
      %562 = vmatpush.msra.mxu0 0.0
      %563 = vmatpush.msra.mxu0 0.0
      %564 = vmatpush.msra.mxu0 0.0
      %565 = vmatpush.msra.mxu0 0.0
      %566 = vmatpush.msra.mxu0 0.0
      %567 = vmatpush.msra.mxu0 0.0
      %568 = vmatpush.msra.mxu0 0.0
      %569 = vmatpush.msra.mxu0 0.0
      %570 = vmatpush.msra.mxu0 0.0
      %571 = vmatpush.msra.mxu0 0.0
      %572 = vmatpush.msra.mxu0 0.0
      %573 = vmatpush.msra.mxu0 0.0
      %574 = vmatpush.msra.mxu0 0.0
      %575 = vmatpush.msra.mxu0 %v555
      %576 = vmatmul.f32.gmra.mxu0 %v552
      %v577 = vpop.f32.mrf.mxu0
      %v578 = vadd.f32 0.0, %v577
      %579 = vdwg.mxu0
      %580 = vmatpush.msra.mxu0 0.0
      %581 = vmatpush.msra.mxu0 0.0
      %582 = vmatpush.msra.mxu0 0.0
      %583 = vmatpush.msra.mxu0 0.0
      %584 = vmatpush.msra.mxu0 0.0
      %585 = vmatpush.msra.mxu0 0.0
      %586 = vmatpush.msra.mxu0 0.0
      %587 = vmatpush.msra.mxu0 0.0
      %588 = vmatpush.msra.mxu0 0.0
      %589 = vmatpush.msra.mxu0 0.0
      %590 = vmatpush.msra.mxu0 0.0
      %591 = vmatpush.msra.mxu0 0.0
      %592 = vmatpush.msra.mxu0 0.0
      %593 = vmatpush.msra.mxu0 0.0
      %594 = vmatpush.msra.mxu0 0.0
      %595 = vmatpush.msra.mxu0 %v558
      %596 = vmatmul.f32.gmra.mxu0 %v552
      %v597 = vpop.f32.mrf.mxu0
      %v598 = vadd.f32 0.0, %v597
      %599 = vdwg.mxu0
      %v600 = vadd.f32 %v533, %v578
      %v601 = vadd.f32 %v534, %v598
      %602 = vst [vmem:[#allocation1] ss:$2 sm:$0xff] %v171
      %v603 = vld.sshfl [vmem:[#allocation1] sm:$0xff pattern:$0x75316420]
      %v604 = vld.sshfl [vmem:[#allocation1 + $0x8] sm:$0xff pattern:$0x75316420]
      %607 = vrot.lane.b32.xlu0 %v603, 113
      %v608 = vpop.permute.xlu0 %607
      %609 = vrot.lane.b32.xlu0 %v604, 113
      %v610 = vpop.permute.xlu0 %609
      %vm611 = vcmp.lt.s32.totalorder %v173, 113
      %v612 = vsel %vm611, %v608, %v610
      %v613 = vsel %vm611, %v610, %v608
      %v614 = vmul.f32 %v197, %v203
      %v615 = vmul.f32 %v198, %v204
      %v616 = vmul.f32 %v612, %v614
      %v617 = vmul.f32 %v613, %v615
      %s618 = scalar_lea.vmem %s1, 48
      %v619 = vld [vmem:[%s618] sm:$0xff]
      %v621 = vsel %vm245, %v619, 0
      %v624 = vsel %vm249, %v616, 0
      %v627 = vsel %vm249, %v617, 0
      %629 = vmatpush.msra.mxu0 0.0
      %630 = vmatpush.msra.mxu0 0.0
      %631 = vmatpush.msra.mxu0 0.0
      %632 = vmatpush.msra.mxu0 0.0
      %633 = vmatpush.msra.mxu0 0.0
      %634 = vmatpush.msra.mxu0 0.0
      %635 = vmatpush.msra.mxu0 0.0
      %636 = vmatpush.msra.mxu0 0.0
      %637 = vmatpush.msra.mxu0 0.0
      %638 = vmatpush.msra.mxu0 0.0
      %639 = vmatpush.msra.mxu0 0.0
      %640 = vmatpush.msra.mxu0 0.0
      %641 = vmatpush.msra.mxu0 0.0
      %642 = vmatpush.msra.mxu0 0.0
      %643 = vmatpush.msra.mxu0 0.0
      %644 = vmatpush.msra.mxu0 %v624
      %645 = vmatmul.f32.gmra.mxu0 %v621
      %v646 = vpop.f32.mrf.mxu0
      %v647 = vadd.f32 0.0, %v646
      %648 = vdwg.mxu0
      %649 = vmatpush.msra.mxu0 0.0
      %650 = vmatpush.msra.mxu0 0.0
      %651 = vmatpush.msra.mxu0 0.0
      %652 = vmatpush.msra.mxu0 0.0
      %653 = vmatpush.msra.mxu0 0.0
      %654 = vmatpush.msra.mxu0 0.0
      %655 = vmatpush.msra.mxu0 0.0
      %656 = vmatpush.msra.mxu0 0.0
      %657 = vmatpush.msra.mxu0 0.0
      %658 = vmatpush.msra.mxu0 0.0
      %659 = vmatpush.msra.mxu0 0.0
      %660 = vmatpush.msra.mxu0 0.0
      %661 = vmatpush.msra.mxu0 0.0
      %662 = vmatpush.msra.mxu0 0.0
      %663 = vmatpush.msra.mxu0 0.0
      %664 = vmatpush.msra.mxu0 %v627
      %665 = vmatmul.f32.gmra.mxu0 %v621
      %v666 = vpop.f32.mrf.mxu0
      %v667 = vadd.f32 0.0, %v666
      %668 = vdwg.mxu0
      %v669 = vadd.f32 %v600, %v647
      %v670 = vadd.f32 %v601, %v667
      %671 = vst [vmem:[#allocation1] ss:$2 sm:$0xff] %v171
      %v672 = vld.sshfl [vmem:[#allocation1] sm:$0xff pattern:$0x75316420]
      %v673 = vld.sshfl [vmem:[#allocation1 + $0x8] sm:$0xff pattern:$0x75316420]
      %676 = vrot.lane.b32.xlu0 %v672, 112
      %v677 = vpop.permute.xlu0 %676
      %678 = vrot.lane.b32.xlu0 %v673, 112
      %v679 = vpop.permute.xlu0 %678
      %vm680 = vcmp.lt.s32.totalorder %v173, 112
      %v681 = vsel %vm680, %v677, %v679
      %v682 = vsel %vm680, %v679, %v677
      %v683 = vmul.f32 %v681, %v197
      %v684 = vmul.f32 %v682, %v198
      %s685 = scalar_lea.vmem %s1, 56
      %v686 = vld [vmem:[%s685] sm:$0xff]
      %v688 = vsel %vm245, %v686, 0
      %v691 = vsel %vm249, %v683, 0
      %v694 = vsel %vm249, %v684, 0
      %696 = vmatpush.msra.mxu0 0.0
      %697 = vmatpush.msra.mxu0 0.0
      %698 = vmatpush.msra.mxu0 0.0
      %699 = vmatpush.msra.mxu0 0.0
      %700 = vmatpush.msra.mxu0 0.0
      %701 = vmatpush.msra.mxu0 0.0
      %702 = vmatpush.msra.mxu0 0.0
      %703 = vmatpush.msra.mxu0 0.0
      %704 = vmatpush.msra.mxu0 0.0
      %705 = vmatpush.msra.mxu0 0.0
      %706 = vmatpush.msra.mxu0 0.0
      %707 = vmatpush.msra.mxu0 0.0
      %708 = vmatpush.msra.mxu0 0.0
      %709 = vmatpush.msra.mxu0 0.0
      %710 = vmatpush.msra.mxu0 0.0
      %711 = vmatpush.msra.mxu0 %v691
      %712 = vmatmul.f32.gmra.mxu0 %v688
      %v713 = vpop.f32.mrf.mxu0
      %v714 = vadd.f32 0.0, %v713
      %715 = vdwg.mxu0
      %716 = vmatpush.msra.mxu0 0.0
      %717 = vmatpush.msra.mxu0 0.0
      %718 = vmatpush.msra.mxu0 0.0
      %719 = vmatpush.msra.mxu0 0.0
      %720 = vmatpush.msra.mxu0 0.0
      %721 = vmatpush.msra.mxu0 0.0
      %722 = vmatpush.msra.mxu0 0.0
      %723 = vmatpush.msra.mxu0 0.0
      %724 = vmatpush.msra.mxu0 0.0
      %725 = vmatpush.msra.mxu0 0.0
      %726 = vmatpush.msra.mxu0 0.0
      %727 = vmatpush.msra.mxu0 0.0
      %728 = vmatpush.msra.mxu0 0.0
      %729 = vmatpush.msra.mxu0 0.0
      %730 = vmatpush.msra.mxu0 0.0
      %731 = vmatpush.msra.mxu0 %v694
      %732 = vmatmul.f32.gmra.mxu0 %v688
      %v733 = vpop.f32.mrf.mxu0
      %v734 = vadd.f32 0.0, %v733
      %735 = vdwg.mxu0
      %v736 = vadd.f32 %v669, %v714
      %v737 = vadd.f32 %v670, %v734
      %738 = vst [vmem:[#allocation1] ss:$2 sm:$0xff] %v171
      %v739 = vld.sshfl [vmem:[#allocation1] sm:$0xff pattern:$0x75316420]
      %v740 = vld.sshfl [vmem:[#allocation1 + $0x8] sm:$0xff pattern:$0x75316420]
      %743 = vrot.lane.b32.xlu0 %v739, 111
      %v744 = vpop.permute.xlu0 %743
      %745 = vrot.lane.b32.xlu0 %v740, 111
      %v746 = vpop.permute.xlu0 %745
      %vm747 = vcmp.lt.s32.totalorder %v173, 111
      %v748 = vsel %vm747, %v744, %v746
      %v749 = vsel %vm747, %v746, %v744
      %v750 = vmul.f32 %v197, %v209
      %v751 = vmul.f32 %v198, %v210
      %v752 = vmul.f32 %v748, %v750
      %v753 = vmul.f32 %v749, %v751
      %s754 = scalar_lea.vmem %s1, 64
      %v755 = vld [vmem:[%s754] sm:$0xff]
      %v757 = vsel %vm245, %v755, 0
      %v760 = vsel %vm249, %v752, 0
      %v763 = vsel %vm249, %v753, 0
      %765 = vmatpush.msra.mxu0 0.0
      %766 = vmatpush.msra.mxu0 0.0
      %767 = vmatpush.msra.mxu0 0.0
      %768 = vmatpush.msra.mxu0 0.0
      %769 = vmatpush.msra.mxu0 0.0
      %770 = vmatpush.msra.mxu0 0.0
      %771 = vmatpush.msra.mxu0 0.0
      %772 = vmatpush.msra.mxu0 0.0
      %773 = vmatpush.msra.mxu0 0.0
      %774 = vmatpush.msra.mxu0 0.0
      %775 = vmatpush.msra.mxu0 0.0
      %776 = vmatpush.msra.mxu0 0.0
      %777 = vmatpush.msra.mxu0 0.0
      %778 = vmatpush.msra.mxu0 0.0
      %779 = vmatpush.msra.mxu0 0.0
      %780 = vmatpush.msra.mxu0 %v760
      %781 = vmatmul.f32.gmra.mxu0 %v757
      %v782 = vpop.f32.mrf.mxu0
      %v783 = vadd.f32 0.0, %v782
      %784 = vdwg.mxu0
      %785 = vmatpush.msra.mxu0 0.0
      %786 = vmatpush.msra.mxu0 0.0
      %787 = vmatpush.msra.mxu0 0.0
      %788 = vmatpush.msra.mxu0 0.0
      %789 = vmatpush.msra.mxu0 0.0
      %790 = vmatpush.msra.mxu0 0.0
      %791 = vmatpush.msra.mxu0 0.0
      %792 = vmatpush.msra.mxu0 0.0
      %793 = vmatpush.msra.mxu0 0.0
      %794 = vmatpush.msra.mxu0 0.0
      %795 = vmatpush.msra.mxu0 0.0
      %796 = vmatpush.msra.mxu0 0.0
      %797 = vmatpush.msra.mxu0 0.0
      %798 = vmatpush.msra.mxu0 0.0
      %799 = vmatpush.msra.mxu0 0.0
      %800 = vmatpush.msra.mxu0 %v763
      %801 = vmatmul.f32.gmra.mxu0 %v757
      %v802 = vpop.f32.mrf.mxu0
      %v803 = vadd.f32 0.0, %v802
      %804 = vdwg.mxu0
      %v805 = vadd.f32 %v736, %v783
      %v806 = vadd.f32 %v737, %v803
      %v807 = vld [vmem:[%s2] sm:$0xff]
      %809 = vset.pattern.permute.xlu0 0
      %810 = vperm.xlu0 %809, %v807
      %v811 = vpop.permute.xlu0 %810
      %v813 = vadd.f32 %v805, %v811
      %v814 = vadd.f32 %v806, %v811
      %vm815 = vcmp.gt.f32.partialorder %v813, 0.0
      %vm816 = vcmp.gt.f32.partialorder %v814, 0.0
      %v817 = vmul.f32 %v813, 0.01
      %v818 = vmul.f32 %v814, 0.01
      %v819 = vsel %vm815, %v813, %v817
      %v820 = vsel %vm816, %v814, %v818
      %821 = vst [vmem:[%s170] sm:$0xff] %v819
      %822 = vst [vmem:[%s170 + $0x8] sm:$0xff] %v820
      %p823 = scmp.lt.s32.totalorder %s14, 1
      %s824 = scalar_select %p823, %s14, 1
      %s825 = smul.addr %s824, 2
      %s826 = smul.addr %s825, 8
      %s827 = scalar_lea.vmem %s3, %s826
      // Predicated region
      $region33: #{convolution_layer.1} parent=31 // pred_check
        %p828 = pneg %p100
      $region34: #{convolution_layer.1} parent=31 // pred_check_branch
        %830 = sbr.rel (%p828) target = $region36
      $region35: #{convolution_layer.1} parent=31 // pred_region
        _
      $region36: #{convolution_layer.1} parent=31 // pred_fallthru
        _
    $region32: #{convolution_layer.1} parent=5 // pred_fallthru
      _
    %p831 = scmp.le.s32.totalorder 2, %s9
    // Predicated region
    $region37: #{convolution_layer.1} parent=5 // pred_check
      %p832 = pneg %p831
    $region38: #{convolution_layer.1} parent=5 // pred_check_branch
      %834 = sbr.rel (%p832) target = $region40
    $region39: #{convolution_layer.1} parent=5 // pred_region
      %s835 = ssub.s32 %s9, 2
      // Predicated region
      $region41: #{convolution_layer.1} parent=39 // pred_check
        %p836 = pneg %p106
      $region42: #{convolution_layer.1} parent=39 // pred_check_branch
        %838 = sbr.rel (%p836) target = $region44
      $region43: #{convolution_layer.1} parent=39 // pred_region
        %p839 = scmp.lt.s32.totalorder %s15, 1
        %s840 = scalar_select %p839, %s15, 1
        %s841 = smul.addr %s840, 2
        %s842 = smul.addr %s841, 8
        %s843 = scalar_lea.vmem %s3, %s842
      $region44: #{convolution_layer.1} parent=39 // pred_fallthru
        _
    $region40: #{convolution_layer.1} parent=5 // pred_fallthru
      _
  $region6: #{convolution_layer.1} parent=0 // loop_footer
    %s13 = sadd.s32 1, %s9
  $region7: #{convolution_layer.1} parent=0 // loop_footer_branch
    %8 = sbr.rel target = $region3
  $region8: #{convolution_layer.1} parent=0 // loop_exit
    _

</llo_original>
